<compile_context>
chip_gen: v7x
topology: tpu7x:2x2x1
jax: 0.10.0
libtpu: 0.0.40
codegen_flags: <defaults>
</compile_context>

<pallas_src>
import functools

import jax
import jax.numpy as jnp
from jax import lax
from jax.experimental import pallas as pl
from jax.experimental.pallas import tpu as pltpu

EPS = 1e-5


def _round_up(x, m):
    return (x + m - 1) // m * m


def _fused_conv_block_kernel(x_ref, w1_ref, w2_ref, g_ref, bt_ref, o_ref, *,
                             n_batch, length, lpad, ksize, pad):
    """conv1 -> BN -> ReLU -> conv2 -> BN -> ReLU, fully fused (shared BN affine).

    x_ref  : (N, Cin_pad, Lpad)      bf16  zero-padded input, per-batch blocks
    w1_ref : (K, Cout_pad, Cin_pad)  bf16  conv1 weight, one (O, I) slab per tap
    w2_ref : (K, Cout_pad, Cout_pad) bf16  conv2 weight
    g/bt   : (Cout_pad, 1)           f32   shared BatchNorm affine (pad rows 0)
    o_ref  : (N, Cout_pad, Lpad)     f32
    """
    cout_pad = o_ref.shape[1]
    ncols = n_batch * lpad
    nl = n_batch * length
    inv_nl = 1.0 / float(nl)

    # ---- lane bookkeeping, computed once and shared by both conv stages ----
    l_idx = lax.broadcasted_iota(jnp.int32, (1, ncols), 1) % lpad
    lane_real = l_idx < length                       # real (non-pad) positions
    tap_ok = []                                      # per-tap lane masks
    for k in range(ksize):
        d = k - pad
        if d == 0:
            tap_ok.append(None)   # centre tap: operands already zero-padded
        else:
            tap_ok.append(lane_real & (l_idx + d >= 0) & (l_idx + d < length))

    gamma = g_ref[...]            # hoisted once; reused by both stages
    beta = bt_ref[...]

    def conv_stage(src_f32, w_ref):
        # In-register im2col: one tap live at a time (XLU roll + f32 lane mask,
        # bf16 cast only at the MXU operand boundary), K small matmuls
        # accumulated in f32.  No K*C x ncols concat buffer.
        acc = None
        for k in range(ksize):
            d = k - pad
            shift = (-d) % ncols
            tap = src_f32 if shift == 0 else pltpu.roll(src_f32, shift=shift,
                                                        axis=1)
            if tap_ok[k] is not None:
                tap = jnp.where(tap_ok[k], tap, 0.0)
            part = jnp.dot(w_ref[k], tap.astype(jnp.bfloat16),
                           preferred_element_type=jnp.float32)
            acc = part if acc is None else acc + part
        return acc

    def bn_scale_shift(acc):
        # Training-mode BatchNorm1d stats on the raw (pre-bias) accumulator.
        # The conv bias cancels exactly under mean subtraction and variance is
        # shift-invariant, so conv-bias + BN affine fold into one per-channel
        # scale/shift.  Pad columns of `acc` are exactly zero -> no masking.
        mean = jnp.sum(acc, axis=1, keepdims=True) * inv_nl
        ex2 = jnp.sum(acc * acc, axis=1, keepdims=True) * inv_nl
        var = ex2 - mean * mean
        scale = gamma * lax.rsqrt(var + EPS)
        shift = beta - scale * mean
        return scale, shift

    # Stitch per-batch lane blocks into one (Cin_pad, N*Lpad) matrix and upcast
    # once (elementwise path stays f32 — cheap even on v5e's VPU).
    x_f = jnp.concatenate([x_ref[i] for i in range(n_batch)],
                          axis=1).astype(jnp.float32)

    # ---- stage 1: conv1 -> BN -> ReLU ----
    acc1 = conv_stage(x_f, w1_ref)
    sc1, sh1 = bn_scale_shift(acc1)
    # zero pad lanes so stage-2 taps and stats stay clean
    h = jnp.where(lane_real, jnp.maximum(acc1 * sc1 + sh1, 0.0), 0.0)

    # ---- stage 2: conv2 -> BN -> ReLU (shared affine, fresh batch stats) ----
    acc2 = conv_stage(h, w2_ref)
    sc2, sh2 = bn_scale_shift(acc2)
    y = jnp.maximum(acc2 * sc2 + sh2, 0.0)

    # lane-dense per-batch stores straight into the (N, Cout_pad, Lpad) output
    for i in range(n_batch):
        o_ref[i] = y[:, i * lpad:(i + 1) * lpad]


def conv_block_forward(x, params, kernel_size=3, padding=1):
    """ConvBlock.forward.  x: (N, Cin, L) f32 -> (N, Cout, L) f32."""
    n, cin, length = x.shape
    cout = params["w1"].shape[0]
    k = kernel_size

    lpad = _round_up(length, 128)        # lane-dense per-batch block
    cin_pad = _round_up(cin, 16)         # bf16 native sublane tile is (16, 128)
    cout_pad = _round_up(cout, 16)

    # ---- wrapper glue is just pad + cast (im2col now happens in-kernel) ----
    x_in = jnp.pad(x, ((0, 0), (0, cin_pad - cin), (0, lpad - length)))
    x_in = x_in.astype(jnp.bfloat16)                       # (N, Cin_pad, Lpad)

    w1_taps = jnp.transpose(params["w1"], (2, 0, 1))       # (K, Cout, Cin)
    w1_taps = jnp.pad(w1_taps, ((0, 0), (0, cout_pad - cout),
                                (0, cin_pad - cin))).astype(jnp.bfloat16)
    w2_taps = jnp.transpose(params["w2"], (2, 0, 1))       # (K, Cout, Cout)
    w2_taps = jnp.pad(w2_taps, ((0, 0), (0, cout_pad - cout),
                                (0, cout_pad - cout))).astype(jnp.bfloat16)

    g = jnp.pad(params["gamma"], (0, cout_pad - cout)).reshape(cout_pad, 1)
    bt = jnp.pad(params["beta"], (0, cout_pad - cout)).reshape(cout_pad, 1)
    g = g.astype(jnp.float32)
    bt = bt.astype(jnp.float32)
    # NOTE: conv biases b1/b2 are intentionally NOT passed to the kernel: with
    # training-mode BatchNorm the bias is removed exactly by mean subtraction,
    # so it cannot affect the returned activations.

    ncols = n * lpad
    # Derived VMEM budget (don't hard-code; gate by device capacity if known).
    est = (2 * cin_pad * ncols * 2            # bf16 input (+ headroom)
           + cin_pad * ncols * 4              # in-kernel f32 upcast of input
           + 6 * cout_pad * ncols * 4         # acc1 / h / acc2 / live taps
           + 2 * n * cout_pad * lpad * 4      # f32 output
           + k * cout_pad * (cin_pad + cout_pad) * 2)
    try:
        vmem_cap = pltpu.get_tpu_info().vmem_capacity_bytes
    except Exception:
        vmem_cap = 64 * 1024 * 1024           # v7x floor (safe on all gens)
    vmem_limit = int(min(vmem_cap, max(16 * 1024 * 1024, 2 * est)))
    # TODO(synk): if 2*est exceeds vmem_cap, fall back to the gridded two-pass
    # BN design instead of a single resident tile.

    kernel = functools.partial(_fused_conv_block_kernel, n_batch=n,
                               length=length, lpad=lpad, ksize=k, pad=padding)

    out = pl.pallas_call(
        kernel,
        out_shape=jax.ShapeDtypeStruct((n, cout_pad, lpad), jnp.float32),
        in_specs=[pl.BlockSpec(memory_space=pltpu.MemorySpace.VMEM)] * 5,
        out_specs=pl.BlockSpec(memory_space=pltpu.MemorySpace.VMEM),
        compiler_params=pltpu.CompilerParams(vmem_limit_bytes=vmem_limit),
    )(x_in, w1_taps, w2_taps, g, bt)

    # Pure slicing — no transpose / relayout epilogue round-trip.
    return out[:, :cout, :length]


# ------------------------- pure-JAX references -------------------------
def _conv1d_ref(x, w, b, padding=1, precision=None, in_dtype=None):
    xx = x if in_dtype is None else x.astype(in_dtype)
    ww = w if in_dtype is None else w.astype(in_dtype)
    y = lax.conv_general_dilated(
        xx, ww, window_strides=(1,), padding=[(padding, padding)],
        dimension_numbers=("NCH", "OIH", "NCH"),
        precision=precision, preferred_element_type=jnp.float32)
    return y + b[None, :, None]


def _bn_relu_ref(h, g, bt):
    mean = jnp.mean(h, axis=(0, 2), keepdims=True)
    var = jnp.mean((h - mean) ** 2, axis=(0, 2), keepdims=True)
    y = g[None, :, None] * (h - mean) * lax.rsqrt(var + EPS) + bt[None, :, None]
    return jnp.maximum(y, 0.0)


def _ref_forward(x, p, in_dtype=None, precision=None):
    h = _bn_relu_ref(_conv1d_ref(x, p["w1"], p["b1"], in_dtype=in_dtype,
                                 precision=precision), p["gamma"], p["beta"])
    return _bn_relu_ref(_conv1d_ref(h, p["w2"], p["b2"], in_dtype=in_dtype,
                                    precision=precision), p["gamma"], p["beta"])


if __name__ == "__main__":
    N, Cin, Cout, L, K = 2, 4, 8, 16, 3

    key = jax.random.PRNGKey(0)
    k1, k2, k3, k4, k5, k6, kx = jax.random.split(key, 7)

    bound1 = 1.0 / jnp.sqrt(Cin * K)           # PyTorch Conv1d uniform bound
    bound2 = 1.0 / jnp.sqrt(Cout * K)
    params = {
        "w1": jax.random.uniform(k1, (Cout, Cin, K), jnp.float32, -bound1, bound1),
        "b1": jax.random.uniform(k2, (Cout,), jnp.float32, -bound1, bound1),
        "w2": jax.random.uniform(k3, (Cout, Cout, K), jnp.float32, -bound2, bound2),
        "b2": jax.random.uniform(k4, (Cout,), jnp.float32, -bound2, bound2),
        # BN affine: deterministic, near the PyTorch defaults (1, 0).
        "gamma": 1.0 + 0.1 * jax.random.normal(k5, (Cout,), jnp.float32),
        "beta": 0.1 * jax.random.normal(k6, (Cout,), jnp.float32),
    }

    x = jax.random.normal(kx, (N, Cin, L), jnp.float32)

    out = jax.block_until_ready(conv_block_forward(x, params))
    assert out.shape == (N, Cout, L), out.shape

    # Tight check: reference with the same numerics as the kernel
    # (bf16 matmul operands, f32 accumulation + f32 BN).
    ref_bf16 = _ref_forward(x, params, in_dtype=jnp.bfloat16)
    assert jnp.allclose(out, ref_bf16, atol=1e-2, rtol=1e-2), (
        float(jnp.max(jnp.abs(out - ref_bf16))))

    # Loose check against the exact f32 module semantics
    # (slack only for the intentional bf16 MXU inputs).
    ref_f32 = _ref_forward(x, params, precision=lax.Precision.HIGHEST)
    assert jnp.allclose(out, ref_f32, atol=1e-1, rtol=1e-1), (
        float(jnp.max(jnp.abs(out - ref_f32))))

    print("KERNEL_OK")
</pallas_src>

<mosaic_0001>
module attributes {stable_mosaic.version = 11 : i64} {
  func.func @_fused_conv_block_kernel(%arg0: memref<2x16x128xbf16, #tpu.memory_space<vmem>>, %arg1: memref<3x16x16xbf16, #tpu.memory_space<vmem>>, %arg2: memref<3x16x16xbf16, #tpu.memory_space<vmem>>, %arg3: memref<16x1xf32, #tpu.memory_space<vmem>>, %arg4: memref<16x1xf32, #tpu.memory_space<vmem>>, %arg5: memref<2x16x128xf32, #tpu.memory_space<vmem>>) attributes {dimension_semantics = [], scalar_prefetch = 0 : i64, scratch_operands = 0 : i64, tpu.core_type = #tpu.core_type<tc>} {
    %0 = tpu.iota {dimensions = array<i32: 1>} : vector<1x256xi32>
    %c128_i32 = arith.constant 128 : i32
    %c0_i32 = arith.constant 0 : i32
    %1 = arith.cmpi eq, %c128_i32, %c0_i32 : i32
    %c1_i32 = arith.constant 1 : i32
    %2 = arith.select %1, %c1_i32, %c128_i32 : i32
    %3 = vector.broadcast %2 : i32 to vector<1x256xi32>
    %4 = arith.remsi %0, %3 : vector<1x256xi32>
    %c0_i32_0 = arith.constant 0 : i32
    %5 = vector.broadcast %c0_i32_0 : i32 to vector<1x256xi32>
    %6 = arith.cmpi ne, %4, %5 : vector<1x256xi32>
    %c0_i32_1 = arith.constant 0 : i32
    %7 = vector.broadcast %c0_i32_1 : i32 to vector<1x256xi32>
    %8 = arith.cmpi slt, %4, %7 : vector<1x256xi32>
    %c0_i32_2 = arith.constant 0 : i32
    %9 = arith.cmpi slt, %2, %c0_i32_2 : i32
    %10 = vector.broadcast %9 : i1 to vector<1x256xi1>
    %11 = vector.broadcast %10 : vector<1x256xi1> to vector<1x256xi1>
    %12 = arith.xori %8, %11 : vector<1x256xi1>
    %13 = arith.andi %12, %6 : vector<1x256xi1>
    %14 = vector.broadcast %2 : i32 to vector<1x256xi32>
    %15 = arith.addi %4, %14 : vector<1x256xi32>
    %16 = arith.select %13, %15, %4 : vector<1x256xi1>, vector<1x256xi32>
    %c16_i32 = arith.constant 16 : i32
    %17 = vector.broadcast %c16_i32 : i32 to vector<1x256xi32>
    %18 = arith.cmpi slt, %16, %17 : vector<1x256xi32>
    %c-1_i32 = arith.constant -1 : i32
    %19 = vector.broadcast %c-1_i32 : i32 to vector<1x256xi32>
    %20 = arith.addi %16, %19 : vector<1x256xi32>
    %c0_i32_3 = arith.constant 0 : i32
    %21 = vector.broadcast %c0_i32_3 : i32 to vector<1x256xi32>
    %22 = arith.cmpi sge, %20, %21 : vector<1x256xi32>
    %23 = arith.andi %18, %22 : vector<1x256xi1>
    %c-1_i32_4 = arith.constant -1 : i32
    %24 = vector.broadcast %c-1_i32_4 : i32 to vector<1x256xi32>
    %25 = arith.addi %16, %24 : vector<1x256xi32>
    %c16_i32_5 = arith.constant 16 : i32
    %26 = vector.broadcast %c16_i32_5 : i32 to vector<1x256xi32>
    %27 = arith.cmpi slt, %25, %26 : vector<1x256xi32>
    %28 = arith.andi %23, %27 : vector<1x256xi1>
    %c1_i32_6 = arith.constant 1 : i32
    %29 = vector.broadcast %c1_i32_6 : i32 to vector<1x256xi32>
    %30 = arith.addi %16, %29 : vector<1x256xi32>
    %c0_i32_7 = arith.constant 0 : i32
    %31 = vector.broadcast %c0_i32_7 : i32 to vector<1x256xi32>
    %32 = arith.cmpi sge, %30, %31 : vector<1x256xi32>
    %33 = arith.andi %18, %32 : vector<1x256xi1>
    %c1_i32_8 = arith.constant 1 : i32
    %34 = vector.broadcast %c1_i32_8 : i32 to vector<1x256xi32>
    %35 = arith.addi %16, %34 : vector<1x256xi32>
    %c16_i32_9 = arith.constant 16 : i32
    %36 = vector.broadcast %c16_i32_9 : i32 to vector<1x256xi32>
    %37 = arith.cmpi slt, %35, %36 : vector<1x256xi32>
    %38 = arith.andi %33, %37 : vector<1x256xi1>
    %c0 = arith.constant 0 : index
    %c0_10 = arith.constant 0 : index
    %39 = vector.load %arg3[%c0, %c0_10] : memref<16x1xf32, #tpu.memory_space<vmem>>, vector<16x1xf32>
    %c0_11 = arith.constant 0 : index
    %c0_12 = arith.constant 0 : index
    %40 = vector.load %arg4[%c0_11, %c0_12] : memref<16x1xf32, #tpu.memory_space<vmem>>, vector<16x1xf32>
    %c0_13 = arith.constant 0 : index
    %c0_14 = arith.constant 0 : index
    %c0_15 = arith.constant 0 : index
    %41 = vector.load %arg0[%c0_13, %c0_14, %c0_15] : memref<2x16x128xbf16, #tpu.memory_space<vmem>>, vector<1x16x128xbf16>
    %42 = vector.shape_cast %41 : vector<1x16x128xbf16> to vector<16x128xbf16>
    %c1 = arith.constant 1 : index
    %c0_16 = arith.constant 0 : index
    %c0_17 = arith.constant 0 : index
    %43 = vector.load %arg0[%c1, %c0_16, %c0_17] : memref<2x16x128xbf16, #tpu.memory_space<vmem>>, vector<1x16x128xbf16>
    %44 = vector.shape_cast %43 : vector<1x16x128xbf16> to vector<16x128xbf16>
    %45 = tpu.concatenate %42, %44 in 1 : vector<16x128xbf16>, vector<16x128xbf16> -> vector<16x256xbf16>
    %46 = arith.extf %45 : vector<16x256xbf16> to vector<16x256xf32>
    %c1_i32_18 = arith.constant 1 : i32
    %47 = tpu.dynamic_rotate %46 by %c1_i32_18 dim 1 : vector<16x256xf32>, i32 -> vector<16x256xf32>
    %cst = arith.constant 0.000000e+00 : f32
    %48 = vector.shape_cast %28 : vector<1x256xi1> to vector<1x256xi1>
    %49 = vector.broadcast %48 : vector<1x256xi1> to vector<16x256xi1>
    %50 = vector.broadcast %cst : f32 to vector<16x256xf32>
    %51 = arith.select %49, %47, %50 : vector<16x256xi1>, vector<16x256xf32>
    %c0_19 = arith.constant 0 : index
    %c0_20 = arith.constant 0 : index
    %c0_21 = arith.constant 0 : index
    %52 = vector.load %arg1[%c0_19, %c0_20, %c0_21] : memref<3x16x16xbf16, #tpu.memory_space<vmem>>, vector<1x16x16xbf16>
    %53 = vector.shape_cast %52 : vector<1x16x16xbf16> to vector<16x16xbf16>
    %54 = arith.truncf %51 : vector<16x256xf32> to vector<16x256xbf16>
    %cst_22 = arith.constant dense<0.000000e+00> : vector<16x256xf32>
    %55 = tpu.matmul %53, %54, %cst_22 {dimension_numbers = #tpu.dot_dimension_numbers<[1], [0], [0], [1], [0, 0, 1, 1], [], []>} : vector<16x16xbf16>, vector<16x256xbf16>, vector<16x256xf32> -> vector<16x256xf32>
    %c1_23 = arith.constant 1 : index
    %c0_24 = arith.constant 0 : index
    %c0_25 = arith.constant 0 : index
    %56 = vector.load %arg1[%c1_23, %c0_24, %c0_25] : memref<3x16x16xbf16, #tpu.memory_space<vmem>>, vector<1x16x16xbf16>
    %57 = vector.shape_cast %56 : vector<1x16x16xbf16> to vector<16x16xbf16>
    %58 = arith.truncf %46 : vector<16x256xf32> to vector<16x256xbf16>
    %cst_26 = arith.constant dense<0.000000e+00> : vector<16x256xf32>
    %59 = tpu.matmul %57, %58, %cst_26 {dimension_numbers = #tpu.dot_dimension_numbers<[1], [0], [0], [1], [0, 0, 1, 1], [], []>} : vector<16x16xbf16>, vector<16x256xbf16>, vector<16x256xf32> -> vector<16x256xf32>
    %60 = arith.addf %55, %59 : vector<16x256xf32>
    %c255_i32 = arith.constant 255 : i32
    %61 = tpu.dynamic_rotate %46 by %c255_i32 dim 1 : vector<16x256xf32>, i32 -> vector<16x256xf32>
    %cst_27 = arith.constant 0.000000e+00 : f32
    %62 = vector.shape_cast %38 : vector<1x256xi1> to vector<1x256xi1>
    %63 = vector.broadcast %62 : vector<1x256xi1> to vector<16x256xi1>
    %64 = vector.broadcast %cst_27 : f32 to vector<16x256xf32>
    %65 = arith.select %63, %61, %64 : vector<16x256xi1>, vector<16x256xf32>
    %c2 = arith.constant 2 : index
    %c0_28 = arith.constant 0 : index
    %c0_29 = arith.constant 0 : index
    %66 = vector.load %arg1[%c2, %c0_28, %c0_29] : memref<3x16x16xbf16, #tpu.memory_space<vmem>>, vector<1x16x16xbf16>
    %67 = vector.shape_cast %66 : vector<1x16x16xbf16> to vector<16x16xbf16>
    %68 = arith.truncf %65 : vector<16x256xf32> to vector<16x256xbf16>
    %cst_30 = arith.constant dense<0.000000e+00> : vector<16x256xf32>
    %69 = tpu.matmul %67, %68, %cst_30 {dimension_numbers = #tpu.dot_dimension_numbers<[1], [0], [0], [1], [0, 0, 1, 1], [], []>} : vector<16x16xbf16>, vector<16x256xbf16>, vector<16x256xf32> -> vector<16x256xf32>
    %70 = arith.addf %60, %69 : vector<16x256xf32>
    %cst_31 = arith.constant dense<0.000000e+00> : vector<16xf32>
    %71 = vector.multi_reduction <add>, %70, %cst_31 [1] : vector<16x256xf32> to vector<16xf32>
    %72 = vector.shape_cast %71 : vector<16xf32> to vector<16x1xf32>
    %cst_32 = arith.constant 3.125000e-02 : f32
    %73 = vector.broadcast %cst_32 : f32 to vector<16x1xf32>
    %74 = arith.mulf %72, %73 : vector<16x1xf32>
    %75 = arith.mulf %70, %70 : vector<16x256xf32>
    %cst_33 = arith.constant dense<0.000000e+00> : vector<16xf32>
    %76 = vector.multi_reduction <add>, %75, %cst_33 [1] : vector<16x256xf32> to vector<16xf32>
    %77 = vector.shape_cast %76 : vector<16xf32> to vector<16x1xf32>
    %cst_34 = arith.constant 3.125000e-02 : f32
    %78 = vector.broadcast %cst_34 : f32 to vector<16x1xf32>
    %79 = arith.mulf %77, %78 : vector<16x1xf32>
    %80 = arith.mulf %74, %74 : vector<16x1xf32>
    %81 = arith.subf %79, %80 : vector<16x1xf32>
    %cst_35 = arith.constant 9.99999974E-6 : f32
    %82 = vector.broadcast %cst_35 : f32 to vector<16x1xf32>
    %83 = arith.addf %81, %82 : vector<16x1xf32>
    %84 = math.rsqrt %83 : vector<16x1xf32>
    %85 = arith.mulf %39, %84 : vector<16x1xf32>
    %86 = arith.mulf %85, %74 : vector<16x1xf32>
    %87 = arith.subf %40, %86 : vector<16x1xf32>
    %88 = vector.broadcast %85 : vector<16x1xf32> to vector<16x256xf32>
    %89 = arith.mulf %70, %88 : vector<16x256xf32>
    %90 = vector.broadcast %87 : vector<16x1xf32> to vector<16x256xf32>
    %91 = arith.addf %89, %90 : vector<16x256xf32>
    %cst_36 = arith.constant 0.000000e+00 : f32
    %92 = vector.broadcast %cst_36 : f32 to vector<16x256xf32>
    %93 = arith.maximumf %91, %92 : vector<16x256xf32>
    %cst_37 = arith.constant 0.000000e+00 : f32
    %94 = vector.shape_cast %18 : vector<1x256xi1> to vector<1x256xi1>
    %95 = vector.broadcast %94 : vector<1x256xi1> to vector<16x256xi1>
    %96 = vector.broadcast %cst_37 : f32 to vector<16x256xf32>
    %97 = arith.select %95, %93, %96 : vector<16x256xi1>, vector<16x256xf32>
    %c1_i32_38 = arith.constant 1 : i32
    %98 = tpu.dynamic_rotate %97 by %c1_i32_38 dim 1 : vector<16x256xf32>, i32 -> vector<16x256xf32>
    %cst_39 = arith.constant 0.000000e+00 : f32
    %99 = vector.shape_cast %28 : vector<1x256xi1> to vector<1x256xi1>
    %100 = vector.broadcast %99 : vector<1x256xi1> to vector<16x256xi1>
    %101 = vector.broadcast %cst_39 : f32 to vector<16x256xf32>
    %102 = arith.select %100, %98, %101 : vector<16x256xi1>, vector<16x256xf32>
    %c0_40 = arith.constant 0 : index
    %c0_41 = arith.constant 0 : index
    %c0_42 = arith.constant 0 : index
    %103 = vector.load %arg2[%c0_40, %c0_41, %c0_42] : memref<3x16x16xbf16, #tpu.memory_space<vmem>>, vector<1x16x16xbf16>
    %104 = vector.shape_cast %103 : vector<1x16x16xbf16> to vector<16x16xbf16>
    %105 = arith.truncf %102 : vector<16x256xf32> to vector<16x256xbf16>
    %cst_43 = arith.constant dense<0.000000e+00> : vector<16x256xf32>
    %106 = tpu.matmul %104, %105, %cst_43 {dimension_numbers = #tpu.dot_dimension_numbers<[1], [0], [0], [1], [0, 0, 1, 1], [], []>} : vector<16x16xbf16>, vector<16x256xbf16>, vector<16x256xf32> -> vector<16x256xf32>
    %c1_44 = arith.constant 1 : index
    %c0_45 = arith.constant 0 : index
    %c0_46 = arith.constant 0 : index
    %107 = vector.load %arg2[%c1_44, %c0_45, %c0_46] : memref<3x16x16xbf16, #tpu.memory_space<vmem>>, vector<1x16x16xbf16>
    %108 = vector.shape_cast %107 : vector<1x16x16xbf16> to vector<16x16xbf16>
    %109 = arith.truncf %97 : vector<16x256xf32> to vector<16x256xbf16>
    %cst_47 = arith.constant dense<0.000000e+00> : vector<16x256xf32>
    %110 = tpu.matmul %108, %109, %cst_47 {dimension_numbers = #tpu.dot_dimension_numbers<[1], [0], [0], [1], [0, 0, 1, 1], [], []>} : vector<16x16xbf16>, vector<16x256xbf16>, vector<16x256xf32> -> vector<16x256xf32>
    %111 = arith.addf %106, %110 : vector<16x256xf32>
    %c255_i32_48 = arith.constant 255 : i32
    %112 = tpu.dynamic_rotate %97 by %c255_i32_48 dim 1 : vector<16x256xf32>, i32 -> vector<16x256xf32>
    %cst_49 = arith.constant 0.000000e+00 : f32
    %113 = vector.shape_cast %38 : vector<1x256xi1> to vector<1x256xi1>
    %114 = vector.broadcast %113 : vector<1x256xi1> to vector<16x256xi1>
    %115 = vector.broadcast %cst_49 : f32 to vector<16x256xf32>
    %116 = arith.select %114, %112, %115 : vector<16x256xi1>, vector<16x256xf32>
    %c2_50 = arith.constant 2 : index
    %c0_51 = arith.constant 0 : index
    %c0_52 = arith.constant 0 : index
    %117 = vector.load %arg2[%c2_50, %c0_51, %c0_52] : memref<3x16x16xbf16, #tpu.memory_space<vmem>>, vector<1x16x16xbf16>
    %118 = vector.shape_cast %117 : vector<1x16x16xbf16> to vector<16x16xbf16>
    %119 = arith.truncf %116 : vector<16x256xf32> to vector<16x256xbf16>
    %cst_53 = arith.constant dense<0.000000e+00> : vector<16x256xf32>
    %120 = tpu.matmul %118, %119, %cst_53 {dimension_numbers = #tpu.dot_dimension_numbers<[1], [0], [0], [1], [0, 0, 1, 1], [], []>} : vector<16x16xbf16>, vector<16x256xbf16>, vector<16x256xf32> -> vector<16x256xf32>
    %121 = arith.addf %111, %120 : vector<16x256xf32>
    %cst_54 = arith.constant dense<0.000000e+00> : vector<16xf32>
    %122 = vector.multi_reduction <add>, %121, %cst_54 [1] : vector<16x256xf32> to vector<16xf32>
    %123 = vector.shape_cast %122 : vector<16xf32> to vector<16x1xf32>
    %cst_55 = arith.constant 3.125000e-02 : f32
    %124 = vector.broadcast %cst_55 : f32 to vector<16x1xf32>
    %125 = arith.mulf %123, %124 : vector<16x1xf32>
    %126 = arith.mulf %121, %121 : vector<16x256xf32>
    %cst_56 = arith.constant dense<0.000000e+00> : vector<16xf32>
    %127 = vector.multi_reduction <add>, %126, %cst_56 [1] : vector<16x256xf32> to vector<16xf32>
    %128 = vector.shape_cast %127 : vector<16xf32> to vector<16x1xf32>
    %cst_57 = arith.constant 3.125000e-02 : f32
    %129 = vector.broadcast %cst_57 : f32 to vector<16x1xf32>
    %130 = arith.mulf %128, %129 : vector<16x1xf32>
    %131 = arith.mulf %125, %125 : vector<16x1xf32>
    %132 = arith.subf %130, %131 : vector<16x1xf32>
    %cst_58 = arith.constant 9.99999974E-6 : f32
    %133 = vector.broadcast %cst_58 : f32 to vector<16x1xf32>
    %134 = arith.addf %132, %133 : vector<16x1xf32>
    %135 = math.rsqrt %134 : vector<16x1xf32>
    %136 = arith.mulf %39, %135 : vector<16x1xf32>
    %137 = arith.mulf %136, %125 : vector<16x1xf32>
    %138 = arith.subf %40, %137 : vector<16x1xf32>
    %139 = vector.broadcast %136 : vector<16x1xf32> to vector<16x256xf32>
    %140 = arith.mulf %121, %139 : vector<16x256xf32>
    %141 = vector.broadcast %138 : vector<16x1xf32> to vector<16x256xf32>
    %142 = arith.addf %140, %141 : vector<16x256xf32>
    %cst_59 = arith.constant 0.000000e+00 : f32
    %143 = vector.broadcast %cst_59 : f32 to vector<16x256xf32>
    %144 = arith.maximumf %142, %143 : vector<16x256xf32>
    %145 = vector.extract_strided_slice %144 {offsets = [0, 0], sizes = [16, 128], strides = [1, 1]} : vector<16x256xf32> to vector<16x128xf32>
    %c0_60 = arith.constant 0 : index
    %c0_61 = arith.constant 0 : index
    %c0_62 = arith.constant 0 : index
    %146 = vector.load %arg5[%c0_60, %c0_61, %c0_62] : memref<2x16x128xf32, #tpu.memory_space<vmem>>, vector<1x16x128xf32>
    %147 = vector.shape_cast %146 : vector<1x16x128xf32> to vector<16x128xf32>
    %148 = vector.shape_cast %145 : vector<16x128xf32> to vector<1x16x128xf32>
    tpu.vector_store %arg5[%c0_60, %c0_61, %c0_62], %148 {strides = array<i32>} : memref<2x16x128xf32, #tpu.memory_space<vmem>>, vector<1x16x128xf32>,
    %149 = vector.extract_strided_slice %144 {offsets = [0, 128], sizes = [16, 128], strides = [1, 1]} : vector<16x256xf32> to vector<16x128xf32>
    %c1_63 = arith.constant 1 : index
    %c0_64 = arith.constant 0 : index
    %c0_65 = arith.constant 0 : index
    %150 = vector.load %arg5[%c1_63, %c0_64, %c0_65] : memref<2x16x128xf32, #tpu.memory_space<vmem>>, vector<1x16x128xf32>
    %151 = vector.shape_cast %150 : vector<1x16x128xf32> to vector<16x128xf32>
    %152 = vector.shape_cast %149 : vector<16x128xf32> to vector<1x16x128xf32>
    tpu.vector_store %arg5[%c1_63, %c0_64, %c0_65], %152 {strides = array<i32>} : memref<2x16x128xf32, #tpu.memory_space<vmem>>, vector<1x16x128xf32>,
    return
  }
}

</mosaic_0001>

<llo_original>
// kernel: tpu_custom_call.1
$region0: #{tpu_custom_call.1}
  #allocation0 [shape = 'u32[]', space=smem, size = 0x4, offset = 0x4, fixed_abs, tag = 'smem constant byte address 0x4 - core index']
  #allocation1 [shape = 'u32[144,128]{1,0:T(1,128)}', space=vmem, size = 0x12000, scoped, tag = 'internal scratch']
  %s0 = inlined_call_operand.hbm [shape: bf16[2,16,128], index: 0, kind: input, shape index: {}]
  %s1 = inlined_call_operand.vmem [shape: bf16[3,16,16], index: 1, kind: input, shape index: {}]
  %s2 = inlined_call_operand.hbm [shape: bf16[3,16,16], index: 2, kind: input, shape index: {}]
  %s3 = inlined_call_operand.vmem [shape: f32[16,1], index: 3, kind: input, shape index: {}]
  %s4 = inlined_call_operand.vmem [shape: f32[16,1], index: 4, kind: input, shape index: {}]
  %s5 = inlined_call_operand.hbm [shape: f32[2,16,128], index: 5, kind: output, shape index: {}]
  %s6 = sld [smem:[#allocation0]]
  $region38: #{tpu_custom_call.1} parent=0
    _
  %s8 = ssub.s32 1, %s6
  %s9 = scalar_select 0, %s8, %s6
  $region1: #{tpu_custom_call.1} parent=0
    #allocation2 [shape = 'u8[8192]{0}', space=vmem, size = 0x2000, scoped, tag = 'input window, operand 0, single buffered']
    #allocation3 [shape = 's32[1]{0}', space=sflag, size = 0x4, scoped, tag = 'scoped memory for tpu_custom_call.1']
    #allocation4 [shape = 's32[1]{0}', space=sflag, size = 0x4, scoped, tag = 'scoped memory for tpu_custom_call.1']
    #allocation5 [shape = 'u8[12288]{0}', space=vmem, size = 0x3000, scoped, tag = 'input window, operand 2, single buffered']
    #allocation6 [shape = 's32[1]{0}', space=sflag, size = 0x4, scoped, tag = 'scoped memory for tpu_custom_call.1']
    #allocation7 [shape = 'u8[16384]{0}', space=vmem, size = 0x4000, scoped, tag = 'output window, operand 0, single buffered']
    %10 = vsyncpa [#allocation3], 0
    %11 = vsyncpa [#allocation6], 0
    %12 = vsyncpa [#allocation4], 0
    // Predicated region
    $region2: #{tpu_custom_call.1} parent=1 // pred_check
      _
    $region3: #{tpu_custom_call.1} parent=1 // pred_check_branch
      %14 = sbr.rel (0) target = $region5
    $region4: #{tpu_custom_call.1} parent=1 // pred_region
      %s16 = ssub.s32 256, 256
      %17 = vsyncadd [#allocation3], %s16
      %s18 = sshll.u32 [#allocation2], 4
      %s19 = int_to_ptr.vmem [resolvable:$true] %s18
      %24 = dma.hbm_to_vmem [thread:$0]  %s0, 256, %s19, [#allocation3], 64, 64, 4
    $region5: #{tpu_custom_call.1} parent=1 // pred_fallthru
      _
    // Predicated region
    $region6: #{tpu_custom_call.1} parent=1 // pred_check
      _
    $region7: #{tpu_custom_call.1} parent=1 // pred_check_branch
      %26 = sbr.rel (0) target = $region9
    $region8: #{tpu_custom_call.1} parent=1 // pred_region
      _
    $region9: #{tpu_custom_call.1} parent=1 // pred_fallthru
      _
    // Predicated region
    $region10: #{tpu_custom_call.1} parent=1 // pred_check
      _
    $region11: #{tpu_custom_call.1} parent=1 // pred_check_branch
      %28 = sbr.rel (0) target = $region13
    $region12: #{tpu_custom_call.1} parent=1 // pred_region
      %s30 = ssub.s32 384, 384
      %31 = vsyncadd [#allocation6], %s30
      %s32 = sshll.u32 [#allocation5], 4
      %s33 = int_to_ptr.vmem [resolvable:$true] %s32
      %38 = dma.hbm_to_vmem [thread:$0]  %s2, 384, %s33, [#allocation6], 64, 64, 4
    $region13: #{tpu_custom_call.1} parent=1 // pred_fallthru
      _
    // Predicated region
    $region14: #{tpu_custom_call.1} parent=1 // pred_check
      _
    $region15: #{tpu_custom_call.1} parent=1 // pred_check_branch
      %40 = sbr.rel (0) target = $region17
    $region16: #{tpu_custom_call.1} parent=1 // pred_region
      _
    $region17: #{tpu_custom_call.1} parent=1 // pred_fallthru
      _
    // Predicated region
    $region18: #{tpu_custom_call.1} parent=1 // pred_check
      _
    $region19: #{tpu_custom_call.1} parent=1 // pred_check_branch
      %42 = sbr.rel (0) target = $region21
    $region20: #{tpu_custom_call.1} parent=1 // pred_region
      _
    $region21: #{tpu_custom_call.1} parent=1 // pred_fallthru
      _
    // Predicated region
    $region22: #{tpu_custom_call.1} parent=1 // pred_check
      _
    $region23: #{tpu_custom_call.1} parent=1 // pred_check_branch
      %44 = sbr.rel (0) target = $region25
    $region24: #{tpu_custom_call.1} parent=1 // pred_region
      %45 = dma.done [#allocation3], 256
    $region25: #{tpu_custom_call.1} parent=1 // pred_fallthru
      _
    // Predicated region
    $region26: #{tpu_custom_call.1} parent=1 // pred_check
      _
    $region27: #{tpu_custom_call.1} parent=1 // pred_check_branch
      %47 = sbr.rel (0) target = $region29
    $region28: #{tpu_custom_call.1} parent=1 // pred_region
      %48 = dma.done [#allocation6], 384
    $region29: #{tpu_custom_call.1} parent=1 // pred_fallthru
      _
    %v50 = vlaneseq
    %v51 = vand.u32 %v50, 127
    %v52 = vadd.s32 %v51, 128
    %vm53 = vcmp.lt.s32.totalorder %v51, 0
    %v54 = vsub.s32 0, %v51
    %v55 = vsel %vm53, %v54, %v51
    %v56 = vshrl.u32 %v55, 7
    %v57 = vand.u32 %v55, 127
    %v58 = vsub.s32 0, %v57
    %v59 = vsel %vm53, %v58, %v57
    %vm60 = vcmp.lt.s32.totalorder %v52, 0
    %v61 = vsub.s32 0, %v52
    %v62 = vsel %vm60, %v61, %v52
    %v63 = vshrl.u32 %v62, 7
    %v64 = vand.u32 %v62, 127
    %v65 = vsub.s32 0, %v64
    %v66 = vsel %vm60, %v65, %v64
    %vm67 = vcmp.ne.s32.totalorder %v59, 0
    %vm68 = vcmp.ne.s32.totalorder %v66, 0
    %vm69 = vcmp.lt.s32.totalorder %v59, 0
    %vm70 = vcmp.lt.s32.totalorder %v66, 0
    %vm71 = vmand %vm69, %vm67
    %vm72 = vmand %vm70, %vm68
    %v73 = vadd.s32 %v59, 128
    %v74 = vadd.s32 %v66, 128
    %v75 = vsel %vm71, %v73, %v59
    %v76 = vsel %vm72, %v74, %v66
    %vm77 = vcmp.lt.s32.totalorder %v75, 16
    %vm78 = vcmp.lt.s32.totalorder %v76, 16
    %v79 = vadd.s32 %v75, 4294967295
    %v80 = vadd.s32 %v76, 4294967295
    %vm81 = vcmp.ge.s32.totalorder %v79, 0
    %vm82 = vcmp.ge.s32.totalorder %v80, 0
    %vm83 = vmand %vm77, %vm81
    %vm84 = vmand %vm78, %vm82
    %vm85 = vcmp.lt.s32.totalorder %v79, 16
    %vm86 = vcmp.lt.s32.totalorder %v80, 16
    %vm87 = vmand %vm83, %vm85
    %vm88 = vmand %vm84, %vm86
    %v89 = vadd.s32 %v75, 1
    %v90 = vadd.s32 %v76, 1
    %vm91 = vcmp.ge.s32.totalorder %v89, 0
    %vm92 = vcmp.ge.s32.totalorder %v90, 0
    %vm93 = vmand %vm77, %vm91
    %vm94 = vmand %vm78, %vm92
    %vm95 = vcmp.lt.s32.totalorder %v89, 16
    %vm96 = vcmp.lt.s32.totalorder %v90, 16
    %vm97 = vmand %vm93, %vm95
    %vm98 = vmand %vm94, %vm96
    %v99 = vld [vmem:[%s3] sm:$0xff]
    %v100 = vld [vmem:[%s3 + $0x8] sm:$0xff]
    %v101 = vld [vmem:[%s4] sm:$0xff]
    %v102 = vld [vmem:[%s4 + $0x8] sm:$0xff]
    %v103 = vld [vmem:[#allocation2] sm:$0xf]
    %v104 = vld [vmem:[#allocation2 + $0x4] sm:$0xf]
    %s105 = scalar_lea.vmem [#allocation2], 8
    %v106 = vld [vmem:[%s105] sm:$0xf]
    %v107 = vld [vmem:[%s105 + $0x4] sm:$0xf]
    %v110 = vunpack.c.l.b16 %v103
    %v111 = vunpack.c.l.b16 %v104
    %v112 = vpack.c.b16 %v111, %v110
    %v116 = vunpack.c.l.b16 %v106
    %v117 = vunpack.c.l.b16 %v107
    %v118 = vpack.c.b16 %v117, %v116
    %v120 = vunpack.c.l.bf16 %v112
    %v121 = vunpack.c.l.bf16 %v118
    %v122 = vunpack.c.h.bf16 %v112
    %v123 = vunpack.c.h.bf16 %v118
    %124 = vrot.lane.b32.xlu0 %v120, 1
    %v125 = vpop.permute.xlu0 %124
    %126 = vrot.lane.b32.xlu0 %v122, 1
    %v127 = vpop.permute.xlu0 %126
    %128 = vrot.lane.b32.xlu0 %v121, 1
    %v129 = vpop.permute.xlu0 %128
    %130 = vrot.lane.b32.xlu0 %v123, 1
    %v131 = vpop.permute.xlu0 %130
    %vm132 = vcmp.lt.s32.totalorder %v51, 1
    %v133 = vsel %vm132, %v125, %v129
    %v134 = vsel %vm132, %v127, %v131
    %v135 = vsel %vm132, %v129, %v125
    %v136 = vsel %vm132, %v131, %v127
    %v137 = vsel %vm87, 1, 0
    %v138 = vsel %vm88, 1, 0
    %vm139 = vcmp.eq.s32.totalorder %v137, 1
    %vm140 = vcmp.eq.s32.totalorder %v138, 1
    %v141 = vsel %vm139, %v135, 0.0
    %v142 = vsel %vm140, %v133, 0.0
    %v143 = vsel %vm139, %v136, 0.0
    %v144 = vsel %vm140, %v134, 0.0
    %v145 = vld [vmem:[%s1] sm:$0xf]
    %v146 = vld [vmem:[%s1 + $0x4] sm:$0xf]
    %v147 = vpack.c.bf16 %v143, %v141
    %v148 = vpack.c.bf16 %v144, %v142
    %s149 = scalar_lea.vmem %s1, 8
    %v150 = vld [vmem:[%s149] sm:$0xf]
    %v151 = vld [vmem:[%s149 + $0x4] sm:$0xf]
    %v154 = vunpack.c.l.b16 %v150
    %v155 = vunpack.c.l.b16 %v151
    %v156 = vpack.c.b16 %v155, %v154
    %vm157 = vcmask 130048
    %v159 = vsel %vm157, %v156, 0
    %161 = vmatprep.subr.bf16.mxu0 %v118
    %162 = vmatpush1.bf16.msra.mxu0 %v112
    %163 = vmatprep.subr.bf16.mxu0 0
    %164 = vmatpush1.bf16.msra.mxu0 0
    %165 = vmatprep.subr.bf16.mxu0 0
    %166 = vmatpush1.bf16.msra.mxu0 0
    %167 = vmatprep.subr.bf16.mxu0 0
    %168 = vmatpush1.bf16.msra.mxu0 0
    %169 = vmatprep.subr.bf16.mxu0 0
    %170 = vmatpush1.bf16.msra.mxu0 0
    %171 = vmatprep.subr.bf16.mxu0 0
    %172 = vmatpush1.bf16.msra.mxu0 0
    %173 = vmatprep.subr.bf16.mxu0 0
    %174 = vmatpush1.bf16.msra.mxu0 0
    %175 = vmatprep.subr.bf16.mxu0 0
    %176 = vmatpush1.bf16.msra.mxu0 0
    %177 = vmatprep.subr.bf16.mxu0 0
    %178 = vmatpush1.bf16.msra.mxu0 0
    %179 = vmatprep.subr.bf16.mxu0 0
    %180 = vmatpush1.bf16.msra.mxu0 0
    %181 = vmatprep.subr.bf16.mxu0 0
    %182 = vmatpush1.bf16.msra.mxu0 0
    %183 = vmatprep.subr.bf16.mxu0 0
    %184 = vmatpush1.bf16.msra.mxu0 0
    %185 = vmatprep.subr.bf16.mxu0 0
    %186 = vmatpush1.bf16.msra.mxu0 0
    %187 = vmatprep.subr.bf16.mxu0 0
    %188 = vmatpush1.bf16.msra.mxu0 0
    %189 = vmatprep.subr.bf16.mxu0 0
    %190 = vmatpush1.bf16.msra.mxu0 0
    %191 = vmatprep.subr.bf16.mxu0 0
    %192 = vmatpush1.bf16.msra.mxu0 0
    %193 = vmatprep.mubr.bf16.mxu0 0
    %194 = vmatmul.mubr.bf16.gmra.mrb[0].mxu0 %v159
    %v195 = vpop.f32.mrb[0].mxu0
    %v196 = vadd.f32 0.0, %v195
    %v197 = vpop.f32.mrb[0].mxu0
    %v198 = vadd.f32 0.0, %v197
    %v199 = vpop.f32.mrb[0].mxu0
    %v200 = vadd.f32 0.0, %v199
    %v201 = vpop.f32.mrb[0].mxu0
    %v202 = vadd.f32 0.0, %v201
    %203 = vdwg.mxu0
    %v206 = vunpack.c.l.b16 %v145
    %v207 = vunpack.c.l.b16 %v146
    %v208 = vpack.c.b16 %v207, %v206
    %v210 = vsel %vm157, %v208, 0
    %212 = vmatprep.subr.bf16.mxu0 %v148
    %213 = vmatpush1.bf16.msra.mxu0 %v147
    %214 = vmatprep.subr.bf16.mxu0 0
    %215 = vmatpush1.bf16.msra.mxu0 0
    %216 = vmatprep.subr.bf16.mxu0 0
    %217 = vmatpush1.bf16.msra.mxu0 0
    %218 = vmatprep.subr.bf16.mxu0 0
    %219 = vmatpush1.bf16.msra.mxu0 0
    %220 = vmatprep.subr.bf16.mxu0 0
    %221 = vmatpush1.bf16.msra.mxu0 0
    %222 = vmatprep.subr.bf16.mxu0 0
    %223 = vmatpush1.bf16.msra.mxu0 0
    %224 = vmatprep.subr.bf16.mxu0 0
    %225 = vmatpush1.bf16.msra.mxu0 0
    %226 = vmatprep.subr.bf16.mxu0 0
    %227 = vmatpush1.bf16.msra.mxu0 0
    %228 = vmatprep.subr.bf16.mxu0 0
    %229 = vmatpush1.bf16.msra.mxu0 0
    %230 = vmatprep.subr.bf16.mxu0 0
    %231 = vmatpush1.bf16.msra.mxu0 0
    %232 = vmatprep.subr.bf16.mxu0 0
    %233 = vmatpush1.bf16.msra.mxu0 0
    %234 = vmatprep.subr.bf16.mxu0 0
    %235 = vmatpush1.bf16.msra.mxu0 0
    %236 = vmatprep.subr.bf16.mxu0 0
    %237 = vmatpush1.bf16.msra.mxu0 0
    %238 = vmatprep.subr.bf16.mxu0 0
    %239 = vmatpush1.bf16.msra.mxu0 0
    %240 = vmatprep.subr.bf16.mxu0 0
    %241 = vmatpush1.bf16.msra.mxu0 0
    %242 = vmatprep.subr.bf16.mxu0 0
    %243 = vmatpush1.bf16.msra.mxu0 0
    %244 = vmatprep.mubr.bf16.mxu0 0
    %245 = vmatmul.mubr.bf16.gmra.mrb[0].mxu0 %v210
    %v246 = vpop.f32.mrb[0].mxu0
    %v247 = vadd.f32 %v196, %v246
    %v248 = vpop.f32.mrb[0].mxu0
    %v249 = vadd.f32 %v198, %v248
    %v250 = vpop.f32.mrb[0].mxu0
    %v251 = vadd.f32 %v200, %v250
    %v252 = vpop.f32.mrb[0].mxu0
    %v253 = vadd.f32 %v202, %v252
    %254 = vdwg.mxu0
    %255 = vrot.lane.b32.xlu0 %v120, 127
    %v256 = vpop.permute.xlu0 %255
    %257 = vrot.lane.b32.xlu0 %v122, 127
    %v258 = vpop.permute.xlu0 %257
    %259 = vrot.lane.b32.xlu0 %v121, 127
    %v260 = vpop.permute.xlu0 %259
    %261 = vrot.lane.b32.xlu0 %v123, 127
    %v262 = vpop.permute.xlu0 %261
    %vm263 = vcmp.lt.s32.totalorder %v51, 127
    %v264 = vsel %vm263, %v256, %v260
    %v265 = vsel %vm263, %v258, %v262
    %v266 = vsel %vm263, %v260, %v256
    %v267 = vsel %vm263, %v262, %v258
    %v268 = vsel %vm97, 1, 0
    %v269 = vsel %vm98, 1, 0
    %vm270 = vcmp.eq.s32.totalorder %v268, 1
    %vm271 = vcmp.eq.s32.totalorder %v269, 1
    %v272 = vsel %vm270, %v264, 0.0
    %v273 = vsel %vm271, %v266, 0.0
    %v274 = vsel %vm270, %v265, 0.0
    %v275 = vsel %vm271, %v267, 0.0
    %s276 = scalar_lea.vmem %s1, 16
    %v277 = vld [vmem:[%s276] sm:$0xf]
    %v278 = vld [vmem:[%s276 + $0x4] sm:$0xf]
    %v279 = vpack.c.bf16 %v274, %v272
    %v280 = vpack.c.bf16 %v275, %v273
    %v283 = vunpack.c.l.b16 %v277
    %v284 = vunpack.c.l.b16 %v278
    %v285 = vpack.c.b16 %v284, %v283
    %v287 = vsel %vm157, %v285, 0
    %289 = vmatprep.subr.bf16.mxu0 %v280
    %290 = vmatpush1.bf16.msra.mxu0 %v279
    %291 = vmatprep.subr.bf16.mxu0 0
    %292 = vmatpush1.bf16.msra.mxu0 0
    %293 = vmatprep.subr.bf16.mxu0 0
    %294 = vmatpush1.bf16.msra.mxu0 0
    %295 = vmatprep.subr.bf16.mxu0 0
    %296 = vmatpush1.bf16.msra.mxu0 0
    %297 = vmatprep.subr.bf16.mxu0 0
    %298 = vmatpush1.bf16.msra.mxu0 0
    %299 = vmatprep.subr.bf16.mxu0 0
    %300 = vmatpush1.bf16.msra.mxu0 0
    %301 = vmatprep.subr.bf16.mxu0 0
    %302 = vmatpush1.bf16.msra.mxu0 0
    %303 = vmatprep.subr.bf16.mxu0 0
    %304 = vmatpush1.bf16.msra.mxu0 0
    %305 = vmatprep.subr.bf16.mxu0 0
    %306 = vmatpush1.bf16.msra.mxu0 0
    %307 = vmatprep.subr.bf16.mxu0 0
    %308 = vmatpush1.bf16.msra.mxu0 0
    %309 = vmatprep.subr.bf16.mxu0 0
    %310 = vmatpush1.bf16.msra.mxu0 0
    %311 = vmatprep.subr.bf16.mxu0 0
    %312 = vmatpush1.bf16.msra.mxu0 0
    %313 = vmatprep.subr.bf16.mxu0 0
    %314 = vmatpush1.bf16.msra.mxu0 0
    %315 = vmatprep.subr.bf16.mxu0 0
    %316 = vmatpush1.bf16.msra.mxu0 0
    %317 = vmatprep.subr.bf16.mxu0 0
    %318 = vmatpush1.bf16.msra.mxu0 0
    %319 = vmatprep.subr.bf16.mxu0 0
    %320 = vmatpush1.bf16.msra.mxu0 0
    %321 = vmatprep.mubr.bf16.mxu0 0
    %322 = vmatmul.mubr.bf16.gmra.mrb[0].mxu0 %v287
    %v323 = vpop.f32.mrb[0].mxu0
    %v324 = vadd.f32 0.0, %v323
    %v325 = vpop.f32.mrb[0].mxu0
    %v326 = vadd.f32 0.0, %v325
    %v327 = vpop.f32.mrb[0].mxu0
    %v328 = vadd.f32 0.0, %v327
    %v329 = vpop.f32.mrb[0].mxu0
    %v330 = vadd.f32 0.0, %v329
    %331 = vdwg.mxu0
    %v332 = vadd.f32 %v247, %v324
    %v333 = vadd.f32 %v249, %v326
    %v334 = vadd.f32 %v251, %v328
    %v335 = vadd.f32 %v253, %v330
    %v336 = vadd.f32 %v332, %v333
    %337 = vadd.xlane.f32.xlu0 %v336
    %v338 = vpop.xlane.xlu0 %337
    %v339 = vadd.f32 %v334, %v335
    %340 = vadd.xlane.f32.xlu0 %v339
    %v341 = vpop.xlane.xlu0 %340
    %v342 = vmul.f32 %v338, 0.03125
    %v343 = vmul.f32 %v341, 0.03125
    %v344 = vmul.f32 %v332, %v332
    %v345 = vmul.f32 %v333, %v333
    %v346 = vmul.f32 %v334, %v334
    %v347 = vmul.f32 %v335, %v335
    %v348 = vadd.f32 %v344, %v345
    %349 = vadd.xlane.f32.xlu0 %v348
    %v350 = vpop.xlane.xlu0 %349
    %v351 = vadd.f32 %v346, %v347
    %352 = vadd.xlane.f32.xlu0 %v351
    %v353 = vpop.xlane.xlu0 %352
    %v354 = vmul.f32 %v350, 0.03125
    %v355 = vmul.f32 %v353, 0.03125
    %v356 = vmul.f32 %v342, %v342
    %v357 = vmul.f32 %v343, %v343
    %v358 = vsub.f32 %v354, %v356
    %v359 = vsub.f32 %v355, %v357
    %v360 = vadd.f32 %v358, 1e-05
    %v361 = vadd.f32 %v359, 1e-05
    %v362 = vrsqrt.pop %v360
    %v363 = vrsqrt.pop %v361
    %v364 = vmul.f32 %v99, %v362
    %v365 = vmul.f32 %v100, %v363
    %v366 = vmul.f32 %v364, %v342
    %v367 = vmul.f32 %v365, %v343
    %v368 = vsub.f32 %v101, %v366
    %v369 = vsub.f32 %v102, %v367
    %371 = vset.pattern.permute.xlu0 0
    %372 = vperm.xlu0 %371, %v364
    %v373 = vpop.permute.xlu0 %372
    %376 = vset.pattern.permute.xlu0 0
    %377 = vperm.xlu0 %376, %v365
    %v378 = vpop.permute.xlu0 %377
    %v380 = vmul.f32 %v332, %v373
    %v381 = vmul.f32 %v333, %v373
    %v382 = vmul.f32 %v334, %v378
    %v383 = vmul.f32 %v335, %v378
    %385 = vset.pattern.permute.xlu0 0
    %386 = vperm.xlu0 %385, %v368
    %v387 = vpop.permute.xlu0 %386
    %390 = vset.pattern.permute.xlu0 0
    %391 = vperm.xlu0 %390, %v369
    %v392 = vpop.permute.xlu0 %391
    %v394 = vadd.f32 %v380, %v387
    %v395 = vadd.f32 %v381, %v387
    %v396 = vadd.f32 %v382, %v392
    %v397 = vadd.f32 %v383, %v392
    %v398 = vmax.f32 %v394, 0.0
    %v399 = vmax.f32 %v395, 0.0
    %v400 = vmax.f32 %v396, 0.0
    %v401 = vmax.f32 %v397, 0.0
    %v402 = vsel %vm77, 1, 0
    %v403 = vsel %vm78, 1, 0
    %vm404 = vcmp.eq.s32.totalorder %v402, 1
    %vm405 = vcmp.eq.s32.totalorder %v403, 1
    %v406 = vsel %vm404, %v398, 0.0
    %v407 = vsel %vm405, %v399, 0.0
    %v408 = vsel %vm404, %v400, 0.0
    %v409 = vsel %vm405, %v401, 0.0
    %410 = vrot.lane.b32.xlu0 %v406, 1
    %v411 = vpop.permute.xlu0 %410
    %412 = vrot.lane.b32.xlu0 %v408, 1
    %v413 = vpop.permute.xlu0 %412
    %414 = vrot.lane.b32.xlu0 %v407, 1
    %v415 = vpop.permute.xlu0 %414
    %416 = vrot.lane.b32.xlu0 %v409, 1
    %v417 = vpop.permute.xlu0 %416
    %v418 = vsel %vm132, %v411, %v415
    %v419 = vsel %vm132, %v413, %v417
    %v420 = vsel %vm132, %v415, %v411
    %v421 = vsel %vm132, %v417, %v413
    %v422 = vsel %vm139, %v420, 0.0
    %v423 = vsel %vm140, %v418, 0.0
    %v424 = vsel %vm139, %v421, 0.0
    %v425 = vsel %vm140, %v419, 0.0
    %v426 = vld [vmem:[#allocation5] sm:$0xf]
    %v427 = vld [vmem:[#allocation5 + $0x4] sm:$0xf]
    %v428 = vpack.c.bf16 %v424, %v422
    %v429 = vpack.c.bf16 %v425, %v423
    %s430 = scalar_lea.vmem [#allocation5], 8
    %v431 = vld [vmem:[%s430] sm:$0xf]
    %v432 = vld [vmem:[%s430 + $0x4] sm:$0xf]
    %v433 = vpack.c.bf16 %v408, %v406
    %v434 = vpack.c.bf16 %v409, %v407
    %v437 = vunpack.c.l.b16 %v431
    %v438 = vunpack.c.l.b16 %v432
    %v439 = vpack.c.b16 %v438, %v437
    %v441 = vsel %vm157, %v439, 0
    %443 = vmatprep.subr.bf16.mxu0 %v434
    %444 = vmatpush1.bf16.msra.mxu0 %v433
    %445 = vmatprep.subr.bf16.mxu0 0
    %446 = vmatpush1.bf16.msra.mxu0 0
    %447 = vmatprep.subr.bf16.mxu0 0
    %448 = vmatpush1.bf16.msra.mxu0 0
    %449 = vmatprep.subr.bf16.mxu0 0
    %450 = vmatpush1.bf16.msra.mxu0 0
    %451 = vmatprep.subr.bf16.mxu0 0
    %452 = vmatpush1.bf16.msra.mxu0 0
    %453 = vmatprep.subr.bf16.mxu0 0
    %454 = vmatpush1.bf16.msra.mxu0 0
    %455 = vmatprep.subr.bf16.mxu0 0
    %456 = vmatpush1.bf16.msra.mxu0 0
    %457 = vmatprep.subr.bf16.mxu0 0
    %458 = vmatpush1.bf16.msra.mxu0 0
    %459 = vmatprep.subr.bf16.mxu0 0
    %460 = vmatpush1.bf16.msra.mxu0 0
    %461 = vmatprep.subr.bf16.mxu0 0
    %462 = vmatpush1.bf16.msra.mxu0 0
    %463 = vmatprep.subr.bf16.mxu0 0
    %464 = vmatpush1.bf16.msra.mxu0 0
    %465 = vmatprep.subr.bf16.mxu0 0
    %466 = vmatpush1.bf16.msra.mxu0 0
    %467 = vmatprep.subr.bf16.mxu0 0
    %468 = vmatpush1.bf16.msra.mxu0 0
    %469 = vmatprep.subr.bf16.mxu0 0
    %470 = vmatpush1.bf16.msra.mxu0 0
    %471 = vmatprep.subr.bf16.mxu0 0
    %472 = vmatpush1.bf16.msra.mxu0 0
    %473 = vmatprep.subr.bf16.mxu0 0
    %474 = vmatpush1.bf16.msra.mxu0 0
    %475 = vmatprep.mubr.bf16.mxu0 0
    %476 = vmatmul.mubr.bf16.gmra.mrb[0].mxu0 %v441
    %v477 = vpop.f32.mrb[0].mxu0
    %v478 = vadd.f32 0.0, %v477
    %v479 = vpop.f32.mrb[0].mxu0
    %v480 = vadd.f32 0.0, %v479
    %v481 = vpop.f32.mrb[0].mxu0
    %v482 = vadd.f32 0.0, %v481
    %v483 = vpop.f32.mrb[0].mxu0
    %v484 = vadd.f32 0.0, %v483
    %485 = vdwg.mxu0
    %v488 = vunpack.c.l.b16 %v426
    %v489 = vunpack.c.l.b16 %v427
    %v490 = vpack.c.b16 %v489, %v488
    %v492 = vsel %vm157, %v490, 0
    %494 = vmatprep.subr.bf16.mxu0 %v429
    %495 = vmatpush1.bf16.msra.mxu0 %v428
    %496 = vmatprep.subr.bf16.mxu0 0
    %497 = vmatpush1.bf16.msra.mxu0 0
    %498 = vmatprep.subr.bf16.mxu0 0
    %499 = vmatpush1.bf16.msra.mxu0 0
    %500 = vmatprep.subr.bf16.mxu0 0
    %501 = vmatpush1.bf16.msra.mxu0 0
    %502 = vmatprep.subr.bf16.mxu0 0
    %503 = vmatpush1.bf16.msra.mxu0 0
    %504 = vmatprep.subr.bf16.mxu0 0
    %505 = vmatpush1.bf16.msra.mxu0 0
    %506 = vmatprep.subr.bf16.mxu0 0
    %507 = vmatpush1.bf16.msra.mxu0 0
    %508 = vmatprep.subr.bf16.mxu0 0
    %509 = vmatpush1.bf16.msra.mxu0 0
    %510 = vmatprep.subr.bf16.mxu0 0
    %511 = vmatpush1.bf16.msra.mxu0 0
    %512 = vmatprep.subr.bf16.mxu0 0
    %513 = vmatpush1.bf16.msra.mxu0 0
    %514 = vmatprep.subr.bf16.mxu0 0
    %515 = vmatpush1.bf16.msra.mxu0 0
    %516 = vmatprep.subr.bf16.mxu0 0
    %517 = vmatpush1.bf16.msra.mxu0 0
    %518 = vmatprep.subr.bf16.mxu0 0
    %519 = vmatpush1.bf16.msra.mxu0 0
    %520 = vmatprep.subr.bf16.mxu0 0
    %521 = vmatpush1.bf16.msra.mxu0 0
    %522 = vmatprep.subr.bf16.mxu0 0
    %523 = vmatpush1.bf16.msra.mxu0 0
    %524 = vmatprep.subr.bf16.mxu0 0
    %525 = vmatpush1.bf16.msra.mxu0 0
    %526 = vmatprep.mubr.bf16.mxu0 0
    %527 = vmatmul.mubr.bf16.gmra.mrb[0].mxu0 %v492
    %v528 = vpop.f32.mrb[0].mxu0
    %v529 = vadd.f32 %v478, %v528
    %v530 = vpop.f32.mrb[0].mxu0
    %v531 = vadd.f32 %v480, %v530
    %v532 = vpop.f32.mrb[0].mxu0
    %v533 = vadd.f32 %v482, %v532
    %v534 = vpop.f32.mrb[0].mxu0
    %v535 = vadd.f32 %v484, %v534
    %536 = vdwg.mxu0
    %537 = vrot.lane.b32.xlu0 %v406, 127
    %v538 = vpop.permute.xlu0 %537
    %539 = vrot.lane.b32.xlu0 %v408, 127
    %v540 = vpop.permute.xlu0 %539
    %541 = vrot.lane.b32.xlu0 %v407, 127
    %v542 = vpop.permute.xlu0 %541
    %543 = vrot.lane.b32.xlu0 %v409, 127
    %v544 = vpop.permute.xlu0 %543
    %v545 = vsel %vm263, %v538, %v542
    %v546 = vsel %vm263, %v540, %v544
    %v547 = vsel %vm263, %v542, %v538
    %v548 = vsel %vm263, %v544, %v540
    %v549 = vsel %vm270, %v545, 0.0
    %v550 = vsel %vm271, %v547, 0.0
    %v551 = vsel %vm270, %v546, 0.0
    %v552 = vsel %vm271, %v548, 0.0
    %s553 = scalar_lea.vmem [#allocation5], 16
    %v554 = vld [vmem:[%s553] sm:$0xf]
    %v555 = vld [vmem:[%s553 + $0x4] sm:$0xf]
    %v556 = vpack.c.bf16 %v551, %v549
    %v557 = vpack.c.bf16 %v552, %v550
    %v560 = vunpack.c.l.b16 %v554
    %v561 = vunpack.c.l.b16 %v555
    %v562 = vpack.c.b16 %v561, %v560
    %v564 = vsel %vm157, %v562, 0
    %566 = vmatprep.subr.bf16.mxu0 %v557
    %567 = vmatpush1.bf16.msra.mxu0 %v556
    %568 = vmatprep.subr.bf16.mxu0 0
    %569 = vmatpush1.bf16.msra.mxu0 0
    %570 = vmatprep.subr.bf16.mxu0 0
    %571 = vmatpush1.bf16.msra.mxu0 0
    %572 = vmatprep.subr.bf16.mxu0 0
    %573 = vmatpush1.bf16.msra.mxu0 0
    %574 = vmatprep.subr.bf16.mxu0 0
    %575 = vmatpush1.bf16.msra.mxu0 0
    %576 = vmatprep.subr.bf16.mxu0 0
    %577 = vmatpush1.bf16.msra.mxu0 0
    %578 = vmatprep.subr.bf16.mxu0 0
    %579 = vmatpush1.bf16.msra.mxu0 0
    %580 = vmatprep.subr.bf16.mxu0 0
    %581 = vmatpush1.bf16.msra.mxu0 0
    %582 = vmatprep.subr.bf16.mxu0 0
    %583 = vmatpush1.bf16.msra.mxu0 0
    %584 = vmatprep.subr.bf16.mxu0 0
    %585 = vmatpush1.bf16.msra.mxu0 0
    %586 = vmatprep.subr.bf16.mxu0 0
    %587 = vmatpush1.bf16.msra.mxu0 0
    %588 = vmatprep.subr.bf16.mxu0 0
    %589 = vmatpush1.bf16.msra.mxu0 0
    %590 = vmatprep.subr.bf16.mxu0 0
    %591 = vmatpush1.bf16.msra.mxu0 0
    %592 = vmatprep.subr.bf16.mxu0 0
    %593 = vmatpush1.bf16.msra.mxu0 0
    %594 = vmatprep.subr.bf16.mxu0 0
    %595 = vmatpush1.bf16.msra.mxu0 0
    %596 = vmatprep.subr.bf16.mxu0 0
    %597 = vmatpush1.bf16.msra.mxu0 0
    %598 = vmatprep.mubr.bf16.mxu0 0
    %599 = vmatmul.mubr.bf16.gmra.mrb[0].mxu0 %v564
    %v600 = vpop.f32.mrb[0].mxu0
    %v601 = vadd.f32 0.0, %v600
    %v602 = vpop.f32.mrb[0].mxu0
    %v603 = vadd.f32 0.0, %v602
    %v604 = vpop.f32.mrb[0].mxu0
    %v605 = vadd.f32 0.0, %v604
    %v606 = vpop.f32.mrb[0].mxu0
    %v607 = vadd.f32 0.0, %v606
    %608 = vdwg.mxu0
    %v609 = vadd.f32 %v529, %v601
    %v610 = vadd.f32 %v531, %v603
    %v611 = vadd.f32 %v533, %v605
    %v612 = vadd.f32 %v535, %v607
    %v613 = vadd.f32 %v609, %v610
    %614 = vadd.xlane.f32.xlu0 %v613
    %v615 = vpop.xlane.xlu0 %614
    %v616 = vadd.f32 %v611, %v612
    %617 = vadd.xlane.f32.xlu0 %v616
    %v618 = vpop.xlane.xlu0 %617
    %v619 = vmul.f32 %v615, 0.03125
    %v620 = vmul.f32 %v618, 0.03125
    %v621 = vmul.f32 %v609, %v609
    %v622 = vmul.f32 %v610, %v610
    %v623 = vmul.f32 %v611, %v611
    %v624 = vmul.f32 %v612, %v612
    %v625 = vadd.f32 %v621, %v622
    %626 = vadd.xlane.f32.xlu0 %v625
    %v627 = vpop.xlane.xlu0 %626
    %v628 = vadd.f32 %v623, %v624
    %629 = vadd.xlane.f32.xlu0 %v628
    %v630 = vpop.xlane.xlu0 %629
    %v631 = vmul.f32 %v627, 0.03125
    %v632 = vmul.f32 %v630, 0.03125
    %v633 = vmul.f32 %v619, %v619
    %v634 = vmul.f32 %v620, %v620
    %v635 = vsub.f32 %v631, %v633
    %v636 = vsub.f32 %v632, %v634
    %v637 = vadd.f32 %v635, 1e-05
    %v638 = vadd.f32 %v636, 1e-05
    %v639 = vrsqrt.pop %v637
    %v640 = vrsqrt.pop %v638
    %v641 = vmul.f32 %v99, %v639
    %v642 = vmul.f32 %v100, %v640
    %v643 = vmul.f32 %v641, %v619
    %v644 = vmul.f32 %v642, %v620
    %v645 = vsub.f32 %v101, %v643
    %v646 = vsub.f32 %v102, %v644
    %648 = vset.pattern.permute.xlu0 0
    %649 = vperm.xlu0 %648, %v641
    %v650 = vpop.permute.xlu0 %649
    %653 = vset.pattern.permute.xlu0 0
    %654 = vperm.xlu0 %653, %v642
    %v655 = vpop.permute.xlu0 %654
    %v657 = vmul.f32 %v609, %v650
    %v658 = vmul.f32 %v610, %v650
    %v659 = vmul.f32 %v611, %v655
    %v660 = vmul.f32 %v612, %v655
    %662 = vset.pattern.permute.xlu0 0
    %663 = vperm.xlu0 %662, %v645
    %v664 = vpop.permute.xlu0 %663
    %667 = vset.pattern.permute.xlu0 0
    %668 = vperm.xlu0 %667, %v646
    %v669 = vpop.permute.xlu0 %668
    %v671 = vadd.f32 %v657, %v664
    %v672 = vadd.f32 %v658, %v664
    %v673 = vadd.f32 %v659, %v669
    %v674 = vadd.f32 %v660, %v669
    %v675 = vmax.f32 %v671, 0.0
    %v676 = vmax.f32 %v672, 0.0
    %v677 = vmax.f32 %v673, 0.0
    %v678 = vmax.f32 %v674, 0.0
    %679 = vst [vmem:[#allocation7] sm:$0xff] %v675
    %680 = vst [vmem:[#allocation7 + $0x8] sm:$0xff] %v677
    %s681 = scalar_lea.vmem [#allocation7], 16
    %682 = vst [vmem:[%s681] sm:$0xff] %v676
    %683 = vst [vmem:[%s681 + $0x8] sm:$0xff] %v678
    // Predicated region
    $region30: #{tpu_custom_call.1} parent=1 // pred_check
      _
    $region31: #{tpu_custom_call.1} parent=1 // pred_check_branch
      %685 = sbr.rel (0) target = $region33
    $region32: #{tpu_custom_call.1} parent=1 // pred_region
      %s687 = ssub.s32 512, 512
      %688 = vsyncadd [#allocation4], %s687
      %s689 = sshll.u32 [#allocation7], 4
      %s690 = int_to_ptr.vmem [resolvable:$true] %s689
      %695 = dma.vmem_to_hbm [thread:$0]  %s690, 512, %s5, [#allocation4], 128, 128, 8
    $region33: #{tpu_custom_call.1} parent=1 // pred_fallthru
      _
    // Predicated region
    $region34: #{tpu_custom_call.1} parent=1 // pred_check
      _
    $region35: #{tpu_custom_call.1} parent=1 // pred_check_branch
      %697 = sbr.rel (0) target = $region37
    $region36: #{tpu_custom_call.1} parent=1 // pred_region
      %698 = dma.done [#allocation4], 512
    $region37: #{tpu_custom_call.1} parent=1 // pred_fallthru
      _
    %699 = vsyncpa [#allocation3], 1
    %700 = vsyncpa [#allocation6], 1
    %701 = vsyncpa [#allocation4], 1

</llo_original>
